<compile_context>
chip_gen: v7x
topology: tpu7x:2x2x1
jax: 0.10.0
libtpu: 0.0.40
codegen_flags: <defaults>
</compile_context>

<pallas_src>
import functools
import math

import jax
import jax.numpy as jnp
from jax import lax
from jax.experimental import pallas as pl
from jax.experimental.pallas import tpu as pltpu


# ---------------------------------------------------------------------------
# Parameter preprocessing (plain JAX, mirrors the reference projection_norm_inf)
# ---------------------------------------------------------------------------
def projection_norm_inf(W, kappa):
    """Project rows of W whose L1 norm exceeds kappa onto the L1 ball of radius kappa."""
    abs_w = jnp.abs(W)
    row_sum = jnp.sum(abs_w, axis=1)
    need = row_sum > kappa
    a_desc = -jnp.sort(-abs_w, axis=1)                      # descending per row
    css = jnp.cumsum(a_desc, axis=1)
    k = jnp.arange(1, W.shape[1] + 1, dtype=W.dtype)
    cond = (a_desc - (css - kappa) / k) > 0
    rho = jnp.sum(cond, axis=1).astype(jnp.int32)           # >= 1 because kappa > 0
    css_rho = jnp.take_along_axis(css, (rho - 1)[:, None], axis=1)[:, 0]
    theta = (css_rho - kappa) / rho.astype(W.dtype)
    proj = jnp.sign(W) * jnp.maximum(abs_w - theta[:, None], 0.0)
    return jnp.where(need[:, None], proj, W)


def _round_up(x, m):
    return ((x + m - 1) // m) * m


def _pad2d(x, rows, cols):
    r, c = x.shape
    if r == rows and c == cols:
        return x
    return jnp.pad(x, ((0, rows - r), (0, cols - c)))


# ---------------------------------------------------------------------------
# Kernel 1: everything (W, A, b_Omega, iterate X) resident in VMEM.
# ---------------------------------------------------------------------------
def _ignn_resident_kernel(W_ref, A_ref, X0_ref, B_ref, out_ref, *, phi, fw_mitr, tol):
    cdtype = W_ref.dtype                       # MXU operand dtype (bf16 by default)
    out_ref[...] = X0_ref[...]                 # f32 master iterate lives in the output ref

    def cond(carry):
        k, err = carry
        return jnp.logical_and(k < fw_mitr, err >= tol)

    def body(carry):
        k, _ = carry
        X = out_ref[...]                                              # f32 master iterate
        WX = jnp.dot(W_ref[...], X.astype(cdtype),
                     preferred_element_type=jnp.float32)
        X_new = phi(jnp.dot(WX.astype(cdtype), A_ref[...],
                            preferred_element_type=jnp.float32) + B_ref[...])
        err = jnp.max(jnp.abs(X_new - X))                             # torch.norm(., inf), f32
        out_ref[...] = X_new
        return k + 1, err

    lax.while_loop(cond, body, (jnp.int32(0), jnp.float32(jnp.inf)))


# ---------------------------------------------------------------------------
# Kernel 2: A stays in HBM and is streamed in TN-wide column panels with a
# manual double buffer; W, b_Omega and the iterate stay VMEM resident.
# ---------------------------------------------------------------------------
def _ignn_streaming_kernel(W_ref, X0_ref, B_ref, A_hbm, out_ref,
                           wx_ref, a_buf, dma_sem, *, phi, fw_mitr, tol, tn):
    cdtype = W_ref.dtype
    n_pad = out_ref.shape[1]
    n_panels = n_pad // tn
    out_ref[...] = X0_ref[...]

    def a_copy(panel, slot):
        start = pl.multiple_of(panel * tn, tn)
        return pltpu.make_async_copy(A_hbm.at[:, pl.ds(start, tn)],
                                     a_buf.at[slot], dma_sem.at[slot])

    def cond(carry):
        k, err = carry
        return jnp.logical_and(k < fw_mitr, err >= tol)

    def body(carry):
        k, _ = carry

        # WX = W @ X, computed panel-by-panel into VMEM scratch (keeps live values small).
        def wx_body(p, carry_in):
            col = pl.ds(pl.multiple_of(p * tn, tn), tn)
            wx_ref[:, col] = jnp.dot(W_ref[...], out_ref[:, col].astype(cdtype),
                                     preferred_element_type=jnp.float32).astype(cdtype)
            return carry_in
        lax.fori_loop(0, n_panels, wx_body, 0)

        a_copy(0, 0).start()                                    # prime the double buffer

        def panel_body(p, err_acc):
            slot = p % 2
            a_copy(p, slot).wait()

            @pl.when(p + 1 < n_panels)
            def _():
                a_copy(p + 1, 1 - slot).start()                 # prefetch next A panel

            col = pl.ds(pl.multiple_of(p * tn, tn), tn)
            x_old = out_ref[:, col]
            x_new = phi(jnp.dot(wx_ref[...], a_buf[slot],
                                preferred_element_type=jnp.float32) + B_ref[:, col])
            out_ref[:, col] = x_new
            return jnp.maximum(err_acc, jnp.max(jnp.abs(x_new - x_old)))

        err = lax.fori_loop(0, n_panels, panel_body, jnp.float32(0.0))
        return k + 1, err

    lax.while_loop(cond, body, (jnp.int32(0), jnp.float32(jnp.inf)))


# Use the fully-resident kernel while its VMEM footprint stays under this budget
# (conservative: v7x has only 64 MiB of VMEM per TensorCore).
_RESIDENT_VMEM_BUDGET = 44 * 1024 * 1024
_VMEM_LIMIT_BYTES = 64 * 1024 * 1024


def implicit_graph_forward(params, X_0, A, U, phi=jax.nn.relu,
                           A_rho=1.0, fw_mitr=300, kappa=0.99, tol=3e-6,
                           compute_dtype=jnp.bfloat16,
                           force_streaming=False, panel_width=None):
    """Pallas-backed ImplicitGraph.forward (forward pass only).

    compute_dtype: dtype of the MXU operands (W, A, X). The master iterate, b_Omega and
    the convergence test stay float32; pass jnp.float32 for bit-faithful (slower) iteration.
    """
    W, Omega_1, Omega_2, bias = params      # Omega_2 / bias unused in the reference forward
    del Omega_2, bias

    W = W.astype(jnp.float32)
    A = A.astype(jnp.float32)
    X_0 = X_0.astype(jnp.float32)
    U = U.astype(jnp.float32)
    Omega_1 = Omega_1.astype(jnp.float32)

    if kappa is not None:
        W = projection_norm_inf(W, kappa / A_rho)           # parameter setup (plain JAX glue)

    m = W.shape[0]
    n = A.shape[0]

    # b_Omega = Omega_1 @ U @ A, reassociated as Omega_1 @ (U @ A) (p*n^2 instead of m*n^2 FLOPs)
    # and computed once in XLA outside the iteration kernel.
    B = jnp.dot(Omega_1, jnp.dot(U, A))

    # Pad to hardware-friendly shapes: lane dim (n) to 128, sublane dim (m) to 16.
    # Zero padding is exact: padded rows/cols of W, A, B are zero, so padded entries of the
    # iterate are phi(0) = 0 and never feed back into the valid region.
    m_pad = _round_up(m, 16)
    n_pad = _round_up(n, 128)

    W_c = _pad2d(W, m_pad, m_pad).astype(compute_dtype)
    A_c = _pad2d(A, n_pad, n_pad).astype(compute_dtype)
    X0_p = _pad2d(X_0, m_pad, n_pad)
    B_p = _pad2d(B, m_pad, n_pad)

    cbytes = jnp.dtype(compute_dtype).itemsize
    flops_per_iter = 2 * m_pad * m_pad * n_pad + 2 * m_pad * n_pad * n_pad
    vmem_spec = pl.BlockSpec(memory_space=pltpu.MemorySpace.VMEM)
    compiler_params = pltpu.CompilerParams(vmem_limit_bytes=_VMEM_LIMIT_BYTES)

    resident_bytes = (n_pad * n_pad * cbytes            # A
                      + m_pad * m_pad * cbytes          # W
                      + 7 * m_pad * n_pad * 4)          # X0, B, out + in-kernel temporaries
    use_streaming = force_streaming or resident_bytes > _RESIDENT_VMEM_BUDGET

    if not use_streaming:
        kernel = functools.partial(_ignn_resident_kernel, phi=phi, fw_mitr=fw_mitr, tol=tol)
        cost = pl.CostEstimate(
            flops=int(fw_mitr * flops_per_iter), transcendentals=0,
            bytes_accessed=int(n_pad * n_pad * cbytes + m_pad * m_pad * cbytes
                               + 3 * m_pad * n_pad * 4))
        out_pad = pl.pallas_call(
            kernel,
            out_shape=jax.ShapeDtypeStruct((m_pad, n_pad), jnp.float32),
            in_specs=[vmem_spec, vmem_spec, vmem_spec, vmem_spec],
            out_specs=vmem_spec,
            compiler_params=compiler_params,
            cost_estimate=cost,
        )(W_c, A_c, X0_p, B_p)
    else:
        # NOTE: 128-wide panels keep the v5e 4x128x128 MXU full; v6e/v7x prefer 256-wide.
        tn = panel_width if panel_width is not None else (256 if n_pad % 256 == 0 else 128)
        assert n_pad % tn == 0 and tn % 128 == 0
        kernel = functools.partial(_ignn_streaming_kernel, phi=phi, fw_mitr=fw_mitr,
                                   tol=tol, tn=tn)
        cost = pl.CostEstimate(
            flops=int(fw_mitr * flops_per_iter), transcendentals=0,
            bytes_accessed=int(fw_mitr * n_pad * n_pad * cbytes + 3 * m_pad * n_pad * 4))
        out_pad = pl.pallas_call(
            kernel,
            out_shape=jax.ShapeDtypeStruct((m_pad, n_pad), jnp.float32),
            in_specs=[vmem_spec, vmem_spec, vmem_spec,
                      pl.BlockSpec(memory_space=pl.ANY)],        # A stays in HBM
            out_specs=vmem_spec,
            scratch_shapes=[
                pltpu.VMEM((m_pad, n_pad), compute_dtype),       # WX
                pltpu.VMEM((2, n_pad, tn), compute_dtype),       # A column-panel double buffer
                pltpu.SemaphoreType.DMA((2,)),
            ],
            compiler_params=compiler_params,
            cost_estimate=cost,
        )(W_c, X0_p, B_p, A_c)

    return out_pad[:m, :n]


# ---------------------------------------------------------------------------
# Pure-JAX f32 reference (for correctness checking in the demo)
# ---------------------------------------------------------------------------
def implicit_graph_reference(params, X_0, A, U, phi=jax.nn.relu,
                             A_rho=1.0, fw_mitr=300, kappa=0.99, tol=3e-6):
    W, Omega_1, _, _ = params
    if kappa is not None:
        W = projection_norm_inf(W, kappa / A_rho)
    B = jnp.dot(jnp.dot(Omega_1, U), A)

    def cond(c):
        k, _, err = c
        return jnp.logical_and(k < fw_mitr, err >= tol)

    def body(c):
        k, X, _ = c
        X_new = phi(jnp.dot(jnp.dot(W, X), A) + B)
        return k + 1, X_new, jnp.max(jnp.abs(X_new - X))

    _, X, _ = lax.while_loop(cond, body, (jnp.int32(0), X_0, jnp.float32(jnp.inf)))
    return X


if __name__ == "__main__":
    p, m = 16, 32
    key = jax.random.PRNGKey(0)
    k_params, k_g1, k_g2 = jax.random.split(key, 3)

    # Deterministic parameter init matching ImplicitGraph.init(): U(-stdv, stdv), stdv = 1/sqrt(m)
    stdv = 1.0 / math.sqrt(m)
    kw, ko1, ko2, kb = jax.random.split(k_params, 4)
    params = (jax.random.uniform(kw, (m, m), jnp.float32, -stdv, stdv),
              jax.random.uniform(ko1, (m, p), jnp.float32, -stdv, stdv),
              jax.random.uniform(ko2, (m, p), jnp.float32, -stdv, stdv),
              jax.random.uniform(kb, (m, 1), jnp.float32, -stdv, stdv))

    def make_graph(k, n):
        ka, kx, ku = jax.random.split(k, 3)
        X_0 = jax.random.uniform(kx, (m, n), jnp.float32, -1.0, 1.0)
        U = jax.random.uniform(ku, (p, n), jnp.float32, -1.0, 1.0)
        raw = jax.random.uniform(ka, (n, n)) < 0.1
        adj = jnp.logical_or(raw, raw.T).astype(jnp.float32) + jnp.eye(n, dtype=jnp.float32)
        d_inv_sqrt = 1.0 / jnp.sqrt(jnp.sum(adj, axis=1))
        A = adj * d_inv_sqrt[:, None] * d_inv_sqrt[None, :]   # sym-normalized, spectral radius <= 1
        return X_0, A, U

    # Case 1: small graph (n=64, padded to 128) on the fully VMEM-resident kernel.
    X_0, A, U = make_graph(k_g1, 64)
    out = jax.block_until_ready(
        implicit_graph_forward(params, X_0, A, U, phi=jax.nn.relu,
                               A_rho=1.0, fw_mitr=300, kappa=0.99))
    ref = implicit_graph_reference(params, X_0, A, U, phi=jax.nn.relu,
                                   A_rho=1.0, fw_mitr=300, kappa=0.99)
    assert out.shape == (m, 64) and out.dtype == jnp.float32
    err = float(jnp.max(jnp.abs(out - ref)))
    assert err < 5e-2, f"resident kernel mismatch vs f32 reference: {err}"

    # Case 2: n=200 (padded to 256 -> two 128-wide panels) forced through the HBM-streaming,
    # double-buffered kernel to exercise that path (manual DMA, dynamic slices, padding).
    X_0s, As, Us = make_graph(k_g2, 200)
    out_s = jax.block_until_ready(
        implicit_graph_forward(params, X_0s, As, Us, phi=jax.nn.relu,
                               A_rho=1.0, fw_mitr=300, kappa=0.99,
                               force_streaming=True, panel_width=128))
    ref_s = implicit_graph_reference(params, X_0s, As, Us, phi=jax.nn.relu,
                                     A_rho=1.0, fw_mitr=300, kappa=0.99)
    assert out_s.shape == (m, 200) and out_s.dtype == jnp.float32
    err_s = float(jnp.max(jnp.abs(out_s - ref_s)))
    assert err_s < 5e-2, f"streaming kernel mismatch vs f32 reference: {err_s}"

    print("KERNEL_OK")
</pallas_src>

<mosaic_0001>
module attributes {stable_mosaic.version = 11 : i64} {
  func.func @_ignn_resident_kernel(%arg0: memref<32x32xbf16, #tpu.memory_space<vmem>>, %arg1: memref<128x128xbf16, #tpu.memory_space<vmem>>, %arg2: memref<32x128xf32, #tpu.memory_space<vmem>>, %arg3: memref<32x128xf32, #tpu.memory_space<vmem>>, %arg4: memref<32x128xf32, #tpu.memory_space<vmem>>) attributes {dimension_semantics = [], scalar_prefetch = 0 : i64, scratch_operands = 0 : i64, tpu.core_type = #tpu.core_type<tc>} {
    %c0 = arith.constant 0 : index
    %c0_0 = arith.constant 0 : index
    %0 = vector.load %arg2[%c0, %c0_0] : memref<32x128xf32, #tpu.memory_space<vmem>>, vector<32x128xf32>
    %c0_1 = arith.constant 0 : index
    %c0_2 = arith.constant 0 : index
    %1 = vector.load %arg4[%c0_1, %c0_2] : memref<32x128xf32, #tpu.memory_space<vmem>>, vector<32x128xf32>
    tpu.vector_store %arg4[%c0_1, %c0_2], %0 {strides = array<i32>} : memref<32x128xf32, #tpu.memory_space<vmem>>, vector<32x128xf32>,
    %c0_i32 = arith.constant 0 : i32
    %cst = arith.constant 0x7F800000 : f32
    %2:2 = scf.while (%arg5 = %c0_i32, %arg6 = %cst) : (i32, f32) -> (i32, f32) {
      %c300_i32 = arith.constant 300 : i32
      %3 = arith.cmpi slt, %arg5, %c300_i32 : i32
      %cst_3 = arith.constant 3.000000e-06 : f32
      %4 = arith.cmpf oge, %arg6, %cst_3 : f32
      %5 = arith.andi %3, %4 : i1
      scf.condition(%5) %arg5, %arg6 : i32, f32
    } do {
    ^bb0(%arg5: i32, %arg6: f32):
      %c0_3 = arith.constant 0 : index
      %c0_4 = arith.constant 0 : index
      %3 = vector.load %arg4[%c0_3, %c0_4] : memref<32x128xf32, #tpu.memory_space<vmem>>, vector<32x128xf32>
      %c0_5 = arith.constant 0 : index
      %c0_6 = arith.constant 0 : index
      %4 = vector.load %arg0[%c0_5, %c0_6] : memref<32x32xbf16, #tpu.memory_space<vmem>>, vector<32x32xbf16>
      %5 = arith.truncf %3 : vector<32x128xf32> to vector<32x128xbf16>
      %cst_7 = arith.constant dense<0.000000e+00> : vector<32x128xf32>
      %6 = tpu.matmul %4, %5, %cst_7 {dimension_numbers = #tpu.dot_dimension_numbers<[1], [0], [0], [1], [0, 0, 1, 1], [], []>} : vector<32x32xbf16>, vector<32x128xbf16>, vector<32x128xf32> -> vector<32x128xf32>
      %7 = arith.truncf %6 : vector<32x128xf32> to vector<32x128xbf16>
      %c0_8 = arith.constant 0 : index
      %c0_9 = arith.constant 0 : index
      %8 = vector.load %arg1[%c0_8, %c0_9] : memref<128x128xbf16, #tpu.memory_space<vmem>>, vector<128x128xbf16>
      %cst_10 = arith.constant dense<0.000000e+00> : vector<32x128xf32>
      %9 = tpu.matmul %7, %8, %cst_10 {dimension_numbers = #tpu.dot_dimension_numbers<[1], [0], [0], [1], [0, 0, 1, 1], [], []>} : vector<32x128xbf16>, vector<128x128xbf16>, vector<32x128xf32> -> vector<32x128xf32>
      %c0_11 = arith.constant 0 : index
      %c0_12 = arith.constant 0 : index
      %10 = vector.load %arg3[%c0_11, %c0_12] : memref<32x128xf32, #tpu.memory_space<vmem>>, vector<32x128xf32>
      %11 = arith.addf %9, %10 : vector<32x128xf32>
      %cst_13 = arith.constant 0.000000e+00 : f32
      %12 = vector.broadcast %cst_13 : f32 to vector<32x128xf32>
      %13 = arith.maximumf %11, %12 : vector<32x128xf32>
      %14 = arith.subf %13, %3 : vector<32x128xf32>
      %15 = math.absf %14 : vector<32x128xf32>
      %16 = vector.shape_cast %15 : vector<32x128xf32> to vector<1x32x128xf32>
      %cst_14 = arith.constant dense<0xFF800000> : vector<1xf32>
      %17 = vector.multi_reduction <maximumf>, %16, %cst_14 [1, 2] : vector<1x32x128xf32> to vector<1xf32>
      %18 = vector.shape_cast %17 : vector<1xf32> to vector<1x1x1xf32>
      %19 = vector.extract %18[0, 0, 0] : f32 from vector<1x1x1xf32>
      %c0_15 = arith.constant 0 : index
      %c0_16 = arith.constant 0 : index
      %20 = vector.load %arg4[%c0_15, %c0_16] : memref<32x128xf32, #tpu.memory_space<vmem>>, vector<32x128xf32>
      tpu.vector_store %arg4[%c0_15, %c0_16], %13 {strides = array<i32>} : memref<32x128xf32, #tpu.memory_space<vmem>>, vector<32x128xf32>,
      %c1_i32 = arith.constant 1 : i32
      %21 = arith.addi %arg5, %c1_i32 : i32
      scf.yield %21, %19 : i32, f32
    }
    return
  }
}

</mosaic_0001>

<llo_original>
// kernel: tpu_custom_call.1
$region0: #{tpu_custom_call.1}
  #allocation0 [shape = 'u32[]', space=smem, size = 0x4, offset = 0x4, fixed_abs, tag = 'smem constant byte address 0x4 - core index']
  #allocation1 [shape = 'u32[144,128]{1,0:T(1,128)}', space=vmem, size = 0x12000, scoped, tag = 'internal scratch']
  %s0 = inlined_call_operand.hbm [shape: bf16[32,32], index: 0, kind: input, shape index: {}]
  %s1 = inlined_call_operand.hbm [shape: bf16[128,128], index: 1, kind: input, shape index: {}]
  %s2 = inlined_call_operand.hbm [shape: f32[32,128], index: 2, kind: input, shape index: {}]
  %s3 = inlined_call_operand.hbm [shape: f32[32,128], index: 3, kind: input, shape index: {}]
  %s4 = inlined_call_operand.hbm [shape: f32[32,128], index: 4, kind: output, shape index: {}]
  %s5 = sld [smem:[#allocation0]]
  $region49: #{tpu_custom_call.1} parent=0
    _
  %s7 = ssub.s32 1, %s5
  %s8 = scalar_select 0, %s7, %s5
  $region1: #{tpu_custom_call.1} parent=0
    #allocation2 [shape = 'u8[8192]{0}', space=vmem, size = 0x2000, scoped, tag = 'input window, operand 0, single buffered']
    #allocation3 [shape = 's32[1]{0}', space=sflag, size = 0x4, scoped, tag = 'scoped memory for tpu_custom_call.1']
    #allocation4 [shape = 's32[1]{0}', space=sflag, size = 0x4, scoped, tag = 'scoped memory for tpu_custom_call.1']
    #allocation5 [shape = 'u8[32768]{0}', space=vmem, size = 0x8000, scoped, tag = 'input window, operand 1, single buffered']
    #allocation6 [shape = 's32[1]{0}', space=sflag, size = 0x4, scoped, tag = 'scoped memory for tpu_custom_call.1']
    #allocation7 [shape = 'u8[16384]{0}', space=vmem, size = 0x4000, scoped, tag = 'input window, operand 2, single buffered']
    #allocation8 [shape = 'u8[16384]{0}', space=vmem, size = 0x4000, scoped, tag = 'input window, operand 3, single buffered']
    #allocation9 [shape = 's32[1]{0}', space=sflag, size = 0x4, scoped, tag = 'scoped memory for tpu_custom_call.1']
    #allocation10 [shape = 'u8[16384]{0}', space=vmem, size = 0x4000, scoped, tag = 'output window, operand 0, single buffered']
    %9 = vsyncpa [#allocation3], 0
    %10 = vsyncpa [#allocation6], 0
    %11 = vsyncpa [#allocation9], 0
    %12 = vsyncpa [#allocation4], 0
    // Predicated region
    $region2: #{tpu_custom_call.1} parent=1 // pred_check
      _
    $region3: #{tpu_custom_call.1} parent=1 // pred_check_branch
      %14 = sbr.rel (0) target = $region5
    $region4: #{tpu_custom_call.1} parent=1 // pred_region
      %s16 = ssub.s32 256, 256
      %17 = vsyncadd [#allocation3], %s16
      %s18 = sshll.u32 [#allocation2], 4
      %s19 = int_to_ptr.vmem [resolvable:$true] %s18
      %24 = dma.hbm_to_vmem [thread:$0]  %s0, 256, %s19, [#allocation3], 64, 64, 4
    $region5: #{tpu_custom_call.1} parent=1 // pred_fallthru
      _
    // Predicated region
    $region6: #{tpu_custom_call.1} parent=1 // pred_check
      _
    $region7: #{tpu_custom_call.1} parent=1 // pred_check_branch
      %26 = sbr.rel (0) target = $region9
    $region8: #{tpu_custom_call.1} parent=1 // pred_region
      %s28 = ssub.s32 1024, 1024
      %29 = vsyncadd [#allocation6], %s28
      %s30 = sshll.u32 [#allocation5], 4
      %s31 = int_to_ptr.vmem [resolvable:$true] %s30
      %36 = dma.hbm_to_vmem [thread:$0]  %s1, 1024, %s31, [#allocation6], 64, 64, 4
    $region9: #{tpu_custom_call.1} parent=1 // pred_fallthru
      _
    // Predicated region
    $region10: #{tpu_custom_call.1} parent=1 // pred_check
      _
    $region11: #{tpu_custom_call.1} parent=1 // pred_check_branch
      %38 = sbr.rel (0) target = $region13
    $region12: #{tpu_custom_call.1} parent=1 // pred_region
      %s40 = ssub.s32 512, 512
      %41 = vsyncadd [#allocation6], %s40
      %s42 = sshll.u32 [#allocation7], 4
      %s43 = int_to_ptr.vmem [resolvable:$true] %s42
      %48 = dma.hbm_to_vmem [thread:$0]  %s2, 512, %s43, [#allocation6], 128, 128, 8
    $region13: #{tpu_custom_call.1} parent=1 // pred_fallthru
      _
    // Predicated region
    $region14: #{tpu_custom_call.1} parent=1 // pred_check
      _
    $region15: #{tpu_custom_call.1} parent=1 // pred_check_branch
      %50 = sbr.rel (0) target = $region17
    $region16: #{tpu_custom_call.1} parent=1 // pred_region
      %s52 = ssub.s32 512, 512
      %53 = vsyncadd [#allocation9], %s52
      %s54 = sshll.u32 [#allocation8], 4
      %s55 = int_to_ptr.vmem [resolvable:$true] %s54
      %60 = dma.hbm_to_vmem [thread:$0]  %s3, 512, %s55, [#allocation9], 128, 128, 8
    $region17: #{tpu_custom_call.1} parent=1 // pred_fallthru
      _
    // Predicated region
    $region18: #{tpu_custom_call.1} parent=1 // pred_check
      _
    $region19: #{tpu_custom_call.1} parent=1 // pred_check_branch
      %62 = sbr.rel (0) target = $region21
    $region20: #{tpu_custom_call.1} parent=1 // pred_region
      %63 = dma.done [#allocation3], 256
    $region21: #{tpu_custom_call.1} parent=1 // pred_fallthru
      _
    // Predicated region
    $region22: #{tpu_custom_call.1} parent=1 // pred_check
      _
    $region23: #{tpu_custom_call.1} parent=1 // pred_check_branch
      %65 = sbr.rel (0) target = $region25
    $region24: #{tpu_custom_call.1} parent=1 // pred_region
      %66 = dma.done [#allocation6], 1024
    $region25: #{tpu_custom_call.1} parent=1 // pred_fallthru
      _
    // Predicated region
    $region26: #{tpu_custom_call.1} parent=1 // pred_check
      _
    $region27: #{tpu_custom_call.1} parent=1 // pred_check_branch
      %68 = sbr.rel (0) target = $region29
    $region28: #{tpu_custom_call.1} parent=1 // pred_region
      %69 = dma.done [#allocation6], 512
    $region29: #{tpu_custom_call.1} parent=1 // pred_fallthru
      _
    // Predicated region
    $region30: #{tpu_custom_call.1} parent=1 // pred_check
      _
    $region31: #{tpu_custom_call.1} parent=1 // pred_check_branch
      %71 = sbr.rel (0) target = $region33
    $region32: #{tpu_custom_call.1} parent=1 // pred_region
      %72 = dma.done [#allocation9], 512
    $region33: #{tpu_custom_call.1} parent=1 // pred_fallthru
      _
    %v74 = vld [vmem:[#allocation7] sm:$0xff]
    %v75 = vld [vmem:[#allocation7 + $0x8] sm:$0xff]
    %v76 = vld [vmem:[#allocation7 + $0x10] sm:$0xff]
    %v77 = vld [vmem:[#allocation7 + $0x18] sm:$0xff]
    %78 = vst [vmem:[#allocation10] sm:$0xff] %v74
    %79 = vst [vmem:[#allocation10 + $0x8] sm:$0xff] %v75
    %80 = vst [vmem:[#allocation10 + $0x10] sm:$0xff] %v76
    %81 = vst [vmem:[#allocation10 + $0x18] sm:$0xff] %v77
    // While loop
    $region34: #{tpu_custom_call.1} parent=1 // loop_pre_header
      _
    $region35: #{tpu_custom_call.1} parent=1 // loop_header
      %s83 = sphi 0, %s314
      %s84 = sphi inf, %s309
      %p85 = scmp.lt.s32.totalorder %s83, 300
      %p86 = scmp.ge.f32.partialorder %s84, 3e-06
      %p87 = pnand %p85, %p86
      %p88 = pneg %p87
    $region36: #{tpu_custom_call.1} parent=1 // loop_header_branch
      %90 = sbr.rel (%p87) target = $region40
    $region37: #{tpu_custom_call.1} parent=1 // loop_body
      %v91 = vld [vmem:[#allocation10] sm:$0xff]
      %v92 = vld [vmem:[#allocation10 + $0x8] sm:$0xff]
      %v93 = vld [vmem:[#allocation10 + $0x10] sm:$0xff]
      %v94 = vld [vmem:[#allocation10 + $0x18] sm:$0xff]
      %v95 = vld [vmem:[#allocation2] sm:$0xf]
      %v96 = vld [vmem:[#allocation2 + $0x4] sm:$0xf]
      %v97 = vld [vmem:[#allocation2 + $0x8] sm:$0xf]
      %v98 = vld [vmem:[#allocation2 + $0xc] sm:$0xf]
      %v99 = vpack.c.bf16 %v92, %v91
      %v100 = vpack.c.bf16 %v94, %v93
      %v105 = vunpack.c.l.b16 %v95
      %v106 = vunpack.c.l.b16 %v96
      %v107 = vunpack.c.l.b16 %v97
      %v108 = vunpack.c.l.b16 %v98
      %v109 = vpack.c.b16 %v106, %v105
      %v110 = vpack.c.b16 %v108, %v107
      %vm111 = vcmask 261120
      %v113 = vsel %vm111, %v109, 0
      %v116 = vsel %vm111, %v110, 0
      %118 = vmatprep.subr.bf16.mxu0 0
      %119 = vmatpush1.bf16.msra.mxu0 %v99
      %120 = vmatprep.subr.bf16.mxu0 0
      %121 = vmatpush1.bf16.msra.mxu0 %v100
      %122 = vmatprep.subr.bf16.mxu0 0
      %123 = vmatpush1.bf16.msra.mxu0 0
      %124 = vmatprep.subr.bf16.mxu0 0
      %125 = vmatpush1.bf16.msra.mxu0 0
      %126 = vmatprep.subr.bf16.mxu0 0
      %127 = vmatpush1.bf16.msra.mxu0 0
      %128 = vmatprep.subr.bf16.mxu0 0
      %129 = vmatpush1.bf16.msra.mxu0 0
      %130 = vmatprep.subr.bf16.mxu0 0
      %131 = vmatpush1.bf16.msra.mxu0 0
      %132 = vmatprep.subr.bf16.mxu0 0
      %133 = vmatpush1.bf16.msra.mxu0 0
      %134 = vmatprep.subr.bf16.mxu0 0
      %135 = vmatpush1.bf16.msra.mxu0 0
      %136 = vmatprep.subr.bf16.mxu0 0
      %137 = vmatpush1.bf16.msra.mxu0 0
      %138 = vmatprep.subr.bf16.mxu0 0
      %139 = vmatpush1.bf16.msra.mxu0 0
      %140 = vmatprep.subr.bf16.mxu0 0
      %141 = vmatpush1.bf16.msra.mxu0 0
      %142 = vmatprep.subr.bf16.mxu0 0
      %143 = vmatpush1.bf16.msra.mxu0 0
      %144 = vmatprep.subr.bf16.mxu0 0
      %145 = vmatpush1.bf16.msra.mxu0 0
      %146 = vmatprep.subr.bf16.mxu0 0
      %147 = vmatpush1.bf16.msra.mxu0 0
      %148 = vmatprep.subr.bf16.mxu0 0
      %149 = vmatpush1.bf16.msra.mxu0 0
      %150 = vmatprep.mubr.bf16.mxu0 0
      %151 = vmatmul.mubr.bf16.gmra.mrb[0].mxu0 %v113
      %v152 = vpop.f32.mrb[0].mxu0
      %v153 = vadd.f32 0.0, %v152
      %v154 = vpop.f32.mrb[0].mxu0
      %v155 = vpop.f32.mrb[0].mxu0
      %v156 = vadd.f32 0.0, %v155
      %v157 = vpop.f32.mrb[0].mxu0
      %158 = vmatprep.mubr.bf16.mxu0 0
      %159 = vmatmul.mubr.bf16.gmra.mrb[0].mxu0 %v116
      %v160 = vpop.f32.mrb[0].mxu0
      %v161 = vadd.f32 0.0, %v160
      %v162 = vpop.f32.mrb[0].mxu0
      %v163 = vpop.f32.mrb[0].mxu0
      %v164 = vadd.f32 0.0, %v163
      %v165 = vpop.f32.mrb[0].mxu0
      %166 = vdwg.mxu0
      %v167 = vpack.c.bf16 %v156, %v153
      %v168 = vpack.c.bf16 %v164, %v161
      %v169 = vld [vmem:[#allocation5] sm:$0xf]
      %v170 = vld [vmem:[#allocation5 + $0x4] sm:$0xf]
      %v171 = vld [vmem:[#allocation5 + $0x8] sm:$0xf]
      %v172 = vld [vmem:[#allocation5 + $0xc] sm:$0xf]
      %v173 = vld [vmem:[#allocation5 + $0x10] sm:$0xf]
      %v174 = vld [vmem:[#allocation5 + $0x14] sm:$0xf]
      %v175 = vld [vmem:[#allocation5 + $0x18] sm:$0xf]
      %v176 = vld [vmem:[#allocation5 + $0x1c] sm:$0xf]
      %v177 = vld [vmem:[#allocation5 + $0x20] sm:$0xf]
      %v178 = vld [vmem:[#allocation5 + $0x24] sm:$0xf]
      %v179 = vld [vmem:[#allocation5 + $0x28] sm:$0xf]
      %v180 = vld [vmem:[#allocation5 + $0x2c] sm:$0xf]
      %v181 = vld [vmem:[#allocation5 + $0x30] sm:$0xf]
      %v182 = vld [vmem:[#allocation5 + $0x34] sm:$0xf]
      %v183 = vld [vmem:[#allocation5 + $0x38] sm:$0xf]
      %v184 = vld [vmem:[#allocation5 + $0x3c] sm:$0xf]
      %v185 = vld [vmem:[#allocation8] sm:$0xff]
      %v186 = vld [vmem:[#allocation8 + $0x8] sm:$0xff]
      %v187 = vld [vmem:[#allocation8 + $0x10] sm:$0xff]
      %v188 = vld [vmem:[#allocation8 + $0x18] sm:$0xff]
      %v205 = vunpack.c.l.b16 %v169
      %v206 = vunpack.c.l.b16 %v170
      %v207 = vunpack.c.l.b16 %v171
      %v208 = vunpack.c.l.b16 %v172
      %v209 = vunpack.c.l.b16 %v173
      %v210 = vunpack.c.l.b16 %v174
      %v211 = vunpack.c.l.b16 %v175
      %v212 = vunpack.c.l.b16 %v176
      %v213 = vunpack.c.l.b16 %v177
      %v214 = vunpack.c.l.b16 %v178
      %v215 = vunpack.c.l.b16 %v179
      %v216 = vunpack.c.l.b16 %v180
      %v217 = vunpack.c.l.b16 %v181
      %v218 = vunpack.c.l.b16 %v182
      %v219 = vunpack.c.l.b16 %v183
      %v220 = vunpack.c.l.b16 %v184
      %v221 = vpack.c.b16 %v206, %v205
      %v222 = vpack.c.b16 %v208, %v207
      %v223 = vpack.c.b16 %v210, %v209
      %v224 = vpack.c.b16 %v212, %v211
      %v225 = vpack.c.b16 %v214, %v213
      %v226 = vpack.c.b16 %v216, %v215
      %v227 = vpack.c.b16 %v218, %v217
      %v228 = vpack.c.b16 %v220, %v219
      %237 = vmatprep.subr.bf16.mxu0 0
      %238 = vmatpush1.bf16.msra.mxu0 %v221
      %239 = vmatprep.subr.bf16.mxu0 0
      %240 = vmatpush1.bf16.msra.mxu0 %v222
      %241 = vmatprep.subr.bf16.mxu0 0
      %242 = vmatpush1.bf16.msra.mxu0 %v223
      %243 = vmatprep.subr.bf16.mxu0 0
      %244 = vmatpush1.bf16.msra.mxu0 %v224
      %245 = vmatprep.subr.bf16.mxu0 0
      %246 = vmatpush1.bf16.msra.mxu0 %v225
      %247 = vmatprep.subr.bf16.mxu0 0
      %248 = vmatpush1.bf16.msra.mxu0 %v226
      %249 = vmatprep.subr.bf16.mxu0 0
      %250 = vmatpush1.bf16.msra.mxu0 %v227
      %251 = vmatprep.subr.bf16.mxu0 0
      %252 = vmatpush1.bf16.msra.mxu0 %v228
      %253 = vmatprep.subr.bf16.mxu0 0
      %254 = vmatpush1.bf16.msra.mxu0 0
      %255 = vmatprep.subr.bf16.mxu0 0
      %256 = vmatpush1.bf16.msra.mxu0 0
      %257 = vmatprep.subr.bf16.mxu0 0
      %258 = vmatpush1.bf16.msra.mxu0 0
      %259 = vmatprep.subr.bf16.mxu0 0
      %260 = vmatpush1.bf16.msra.mxu0 0
      %261 = vmatprep.subr.bf16.mxu0 0
      %262 = vmatpush1.bf16.msra.mxu0 0
      %263 = vmatprep.subr.bf16.mxu0 0
      %264 = vmatpush1.bf16.msra.mxu0 0
      %265 = vmatprep.subr.bf16.mxu0 0
      %266 = vmatpush1.bf16.msra.mxu0 0
      %267 = vmatprep.subr.bf16.mxu0 0
      %268 = vmatpush1.bf16.msra.mxu0 0
      %269 = vmatprep.mubr.bf16.mxu0 0
      %270 = vmatmul.mubr.bf16.gmra.mrb[0].mxu0 %v167
      %v271 = vpop.f32.mrb[0].mxu0
      %v272 = vadd.f32 %v185, %v271
      %v273 = vpop.f32.mrb[0].mxu0
      %v274 = vpop.f32.mrb[0].mxu0
      %v275 = vadd.f32 %v186, %v274
      %v276 = vpop.f32.mrb[0].mxu0
      %277 = vmatprep.mubr.bf16.mxu0 0
      %278 = vmatmul.mubr.bf16.gmra.mrb[0].mxu0 %v168
      %v279 = vpop.f32.mrb[0].mxu0
      %v280 = vadd.f32 %v187, %v279
      %v281 = vpop.f32.mrb[0].mxu0
      %v282 = vpop.f32.mrb[0].mxu0
      %v283 = vadd.f32 %v188, %v282
      %v284 = vpop.f32.mrb[0].mxu0
      %285 = vdwg.mxu0
      %v286 = vmax.f32 %v272, 0.0
      %v287 = vmax.f32 %v275, 0.0
      %v288 = vmax.f32 %v280, 0.0
      %v289 = vmax.f32 %v283, 0.0
      %v290 = vsub.f32 %v286, %v91
      %v291 = vsub.f32 %v287, %v92
      %v292 = vsub.f32 %v288, %v93
      %v293 = vsub.f32 %v289, %v94
      %v294 = vand.u32 2147483647, %v290
      %v295 = vand.u32 2147483647, %v291
      %v296 = vand.u32 2147483647, %v292
      %v297 = vand.u32 2147483647, %v293
      %v298 = vmax.f32 %v294, %v295
      %v299 = vmax.f32 %v296, %v297
      %v300 = vmax.f32 %v298, %v299
      %301 = vmax.xlane.f32.xlu0 %v300
      %v302 = vpop.xlane.xlu0 %301
      %v303 = vrot.slane %v302, 4
      %v304 = vmax.f32 %v302, %v303
      %v305 = vrot.slane %v304, 2
      %v306 = vmax.f32 %v304, %v305
      %v307 = vrot.slane %v306, 1
      %v308 = vmax.f32 %v306, %v307
      %s309 = vtos %v308
      %310 = vst [vmem:[#allocation10] sm:$0xff] %v286
      %311 = vst [vmem:[#allocation10 + $0x8] sm:$0xff] %v287
      %312 = vst [vmem:[#allocation10 + $0x10] sm:$0xff] %v288
      %313 = vst [vmem:[#allocation10 + $0x18] sm:$0xff] %v289
      %s314 = sadd.s32 %s83, 1
    $region38: #{tpu_custom_call.1} parent=1 // loop_footer
      _
    $region39: #{tpu_custom_call.1} parent=1 // loop_footer_branch
      %82 = sbr.rel target = $region35
    $region40: #{tpu_custom_call.1} parent=1 // loop_exit
      _
    // Predicated region
    $region41: #{tpu_custom_call.1} parent=1 // pred_check
      _
    $region42: #{tpu_custom_call.1} parent=1 // pred_check_branch
      %316 = sbr.rel (0) target = $region44
    $region43: #{tpu_custom_call.1} parent=1 // pred_region
      %s318 = ssub.s32 512, 512
      %319 = vsyncadd [#allocation4], %s318
      %s320 = sshll.u32 [#allocation10], 4
      %s321 = int_to_ptr.vmem [resolvable:$true] %s320
      %326 = dma.vmem_to_hbm [thread:$0]  %s321, 512, %s4, [#allocation4], 128, 128, 8
    $region44: #{tpu_custom_call.1} parent=1 // pred_fallthru
      _
    // Predicated region
    $region45: #{tpu_custom_call.1} parent=1 // pred_check
      _
    $region46: #{tpu_custom_call.1} parent=1 // pred_check_branch
      %328 = sbr.rel (0) target = $region48
    $region47: #{tpu_custom_call.1} parent=1 // pred_region
      %329 = dma.done [#allocation4], 512
    $region48: #{tpu_custom_call.1} parent=1 // pred_fallthru
      _
    %330 = vsyncpa [#allocation3], 1
    %331 = vsyncpa [#allocation6], 1
    %332 = vsyncpa [#allocation9], 1
    %333 = vsyncpa [#allocation4], 1

</llo_original>
